<compile_context>
chip_gen: v6e
topology: v6e:2x2x1
jax: 0.10.0
libtpu: 0.0.40
codegen_flags: <defaults>
</compile_context>

<pallas_src>
import jax
import jax.numpy as jnp
from jax.experimental import pallas as pl
from jax.experimental.pallas import tpu as pltpu

_LANE = 1024  # lane-dense output width (multiple of 128)


def _mix32(x):
    """lowbias32-style avalanche mix on uint32 (good statistical scrambling)."""
    x = x ^ (x >> jnp.uint32(16))
    x = x * jnp.uint32(0x7FEB352D)
    x = x ^ (x >> jnp.uint32(15))
    x = x * jnp.uint32(0x846CA68B)
    x = x ^ (x >> jnp.uint32(16))
    return x


def _bits_to_uniform(bits_u32):
    """Map raw 32-bit values to float32 uniform in [0, 1) via mantissa trick."""
    mant = (bits_u32 >> jnp.uint32(9)) | jnp.uint32(0x3F800000)  # [1, 2)
    return jax.lax.bitcast_convert_type(mant, jnp.float32) - 1.0


def randn_kernel(seed_ref, out_ref):
    # seed_ref: SMEM scalar-prefetch int32[1]
    # out_ref : VMEM block (tile_rows, _LANE), lane-dense
    rows, lane = out_ref.shape
    half = lane // 2

    tile_u = pl.program_id(0).astype(jnp.uint32)
    seed_u = seed_ref[0].astype(jnp.uint32)

    # Unique per-element counter across the whole output (uint32 wraparound ok).
    row = jax.lax.broadcasted_iota(jnp.uint32, (rows, half), 0)
    col = jax.lax.broadcasted_iota(jnp.uint32, (rows, half), 1)
    idx = row * jnp.uint32(half) + col
    gidx = idx + tile_u * jnp.uint32(rows * half)

    # Hash the seed/block into the stream (scalar-unit work is free here).
    key = seed_u * jnp.uint32(0x9E3779B9) + jnp.uint32(0x85EBCA6B)
    base = gidx * jnp.uint32(0x9E3779B9) + key  # Weyl sequence + key

    bits1 = _mix32(base ^ jnp.uint32(0x68E31DA4))
    bits2 = _mix32(base ^ jnp.uint32(0xB5297A4D))

    u1 = 1.0 - _bits_to_uniform(bits1)  # (0, 1]  -> log() safe
    u2 = _bits_to_uniform(bits2)        # [0, 1)

    # Box-Muller, using BOTH outputs to fill the tile.
    r = jnp.sqrt(-2.0 * jnp.log(u1))
    theta = (2.0 * jnp.pi) * u2
    out_ref[:, :half] = (r * jnp.cos(theta)).astype(out_ref.dtype)
    out_ref[:, half:] = (r * jnp.sin(theta)).astype(out_ref.dtype)


def my_awesome_model(x, output_dim, seed=0):
    """JAX/Pallas equivalent of MyAwesomeModel(output_dim).forward(x)."""
    B = int(x.shape[0])
    c_half = int(x.shape[1] // 2)
    total = B * c_half * int(output_dim)

    # Lane-dense flat tiling: (padded_rows, _LANE) f32, covering `total` elems.
    n_rows = -(-total // _LANE)                         # ceil
    tile_rows = min(512, ((n_rows + 7) // 8) * 8)       # (8,128)-aligned, <=2MiB/blk
    n_tiles = -(-n_rows // tile_rows)
    padded_rows = n_tiles * tile_rows

    seed_arr = jnp.asarray([seed], dtype=jnp.int32)

    flat = pl.pallas_call(
        randn_kernel,
        out_shape=jax.ShapeDtypeStruct((padded_rows, _LANE), jnp.float32),
        grid_spec=pltpu.PrefetchScalarGridSpec(
            num_scalar_prefetch=1,            # seed lands in SMEM
            grid=(n_tiles,),
            in_specs=[],
            out_specs=pl.BlockSpec((tile_rows, _LANE), lambda t, seed: (t, 0)),
        ),
        compiler_params=pltpu.CompilerParams(
            # Blocks are fully independent (stateless counter PRNG) ->
            # shard across TensorCores on v7x; neutral on v5e/v6e.
            dimension_semantics=("parallel",),
        ),
    )(seed_arr)

    return flat.reshape(-1)[:total].reshape(B, c_half, output_dim)


if __name__ == "__main__":
    key = jax.random.PRNGKey(0)
    # Small NCHW-style input; only x.shape[0] and x.shape[1] are used.
    x = jax.random.normal(key, (2, 4, 16, 16), dtype=jnp.float32)
    output_dim = 32

    out = my_awesome_model(x, output_dim=output_dim, seed=0)
    out = jax.block_until_ready(out)

    assert out.shape == (2, 2, 32), out.shape
    assert out.dtype == jnp.float32, out.dtype
    assert bool(jnp.all(jnp.isfinite(out)))
    # Loose N(0,1) sanity check (128 samples).
    assert abs(float(jnp.mean(out))) < 0.5
    assert 0.4 < float(jnp.std(out)) < 1.6
    print("KERNEL_OK")
</pallas_src>

<mosaic_0001>
module attributes {stable_mosaic.version = 11 : i64} {
  func.func @randn_kernel(%arg0: i32, %arg1: memref<1xi32, #tpu.memory_space<smem>>, %arg2: memref<8x1024xf32, #tpu.memory_space<vmem>>) attributes {dimension_semantics = [#tpu.dimension_semantics<parallel>], iteration_bounds = array<i64: 1>, scalar_prefetch = 1 : i64, scratch_operands = 0 : i64, tpu.core_type = #tpu.core_type<tc>, window_params = [{transform_indices = @transform_0, window_bounds = array<i64: 8, 1024>}]} {
    %c0 = arith.constant 0 : index
    %0 = memref.load %arg1[%c0] : memref<1xi32, #tpu.memory_space<smem>>
    %1 = tpu.iota {dimensions = array<i32: 0>} : vector<8x512xi32>
    %2 = tpu.iota {dimensions = array<i32: 1>} : vector<8x512xi32>
    %c512_i32 = arith.constant 512 : i32
    %3 = vector.broadcast %c512_i32 : i32 to vector<8x512xi32>
    %4 = arith.muli %1, %3 : vector<8x512xi32>
    %5 = arith.addi %4, %2 : vector<8x512xi32>
    %c4096_i32 = arith.constant 4096 : i32
    %6 = arith.muli %arg0, %c4096_i32 : i32
    %7 = vector.broadcast %6 : i32 to vector<8x512xi32>
    %8 = arith.addi %5, %7 : vector<8x512xi32>
    %c-1640531527_i32 = arith.constant -1640531527 : i32
    %9 = arith.muli %0, %c-1640531527_i32 : i32
    %c-2048144789_i32 = arith.constant -2048144789 : i32
    %10 = arith.addi %9, %c-2048144789_i32 : i32
    %c-1640531527_i32_0 = arith.constant -1640531527 : i32
    %11 = vector.broadcast %c-1640531527_i32_0 : i32 to vector<8x512xi32>
    %12 = arith.muli %8, %11 : vector<8x512xi32>
    %13 = vector.broadcast %10 : i32 to vector<8x512xi32>
    %14 = arith.addi %12, %13 : vector<8x512xi32>
    %c1759714724_i32 = arith.constant 1759714724 : i32
    %15 = vector.broadcast %c1759714724_i32 : i32 to vector<8x512xi32>
    %16 = arith.xori %14, %15 : vector<8x512xi32>
    %c16_i32 = arith.constant 16 : i32
    %17 = vector.broadcast %c16_i32 : i32 to vector<8x512xi32>
    %18 = arith.shrui %16, %17 : vector<8x512xi32>
    %19 = arith.xori %16, %18 : vector<8x512xi32>
    %c2146121005_i32 = arith.constant 2146121005 : i32
    %20 = vector.broadcast %c2146121005_i32 : i32 to vector<8x512xi32>
    %21 = arith.muli %19, %20 : vector<8x512xi32>
    %c15_i32 = arith.constant 15 : i32
    %22 = vector.broadcast %c15_i32 : i32 to vector<8x512xi32>
    %23 = arith.shrui %21, %22 : vector<8x512xi32>
    %24 = arith.xori %21, %23 : vector<8x512xi32>
    %c-2073254261_i32 = arith.constant -2073254261 : i32
    %25 = vector.broadcast %c-2073254261_i32 : i32 to vector<8x512xi32>
    %26 = arith.muli %24, %25 : vector<8x512xi32>
    %c16_i32_1 = arith.constant 16 : i32
    %27 = vector.broadcast %c16_i32_1 : i32 to vector<8x512xi32>
    %28 = arith.shrui %26, %27 : vector<8x512xi32>
    %29 = arith.xori %26, %28 : vector<8x512xi32>
    %c-1255572915_i32 = arith.constant -1255572915 : i32
    %30 = vector.broadcast %c-1255572915_i32 : i32 to vector<8x512xi32>
    %31 = arith.xori %14, %30 : vector<8x512xi32>
    %c16_i32_2 = arith.constant 16 : i32
    %32 = vector.broadcast %c16_i32_2 : i32 to vector<8x512xi32>
    %33 = arith.shrui %31, %32 : vector<8x512xi32>
    %34 = arith.xori %31, %33 : vector<8x512xi32>
    %c2146121005_i32_3 = arith.constant 2146121005 : i32
    %35 = vector.broadcast %c2146121005_i32_3 : i32 to vector<8x512xi32>
    %36 = arith.muli %34, %35 : vector<8x512xi32>
    %c15_i32_4 = arith.constant 15 : i32
    %37 = vector.broadcast %c15_i32_4 : i32 to vector<8x512xi32>
    %38 = arith.shrui %36, %37 : vector<8x512xi32>
    %39 = arith.xori %36, %38 : vector<8x512xi32>
    %c-2073254261_i32_5 = arith.constant -2073254261 : i32
    %40 = vector.broadcast %c-2073254261_i32_5 : i32 to vector<8x512xi32>
    %41 = arith.muli %39, %40 : vector<8x512xi32>
    %c16_i32_6 = arith.constant 16 : i32
    %42 = vector.broadcast %c16_i32_6 : i32 to vector<8x512xi32>
    %43 = arith.shrui %41, %42 : vector<8x512xi32>
    %44 = arith.xori %41, %43 : vector<8x512xi32>
    %c9_i32 = arith.constant 9 : i32
    %45 = vector.broadcast %c9_i32 : i32 to vector<8x512xi32>
    %46 = arith.shrui %29, %45 : vector<8x512xi32>
    %c1065353216_i32 = arith.constant 1065353216 : i32
    %47 = vector.broadcast %c1065353216_i32 : i32 to vector<8x512xi32>
    %48 = arith.ori %46, %47 : vector<8x512xi32>
    %49 = tpu.bitcast %48 : vector<8x512xi32> -> vector<8x512xf32>
    %cst = arith.constant 1.000000e+00 : f32
    %50 = vector.broadcast %cst : f32 to vector<8x512xf32>
    %51 = arith.subf %49, %50 : vector<8x512xf32>
    %cst_7 = arith.constant 1.000000e+00 : f32
    %52 = vector.broadcast %cst_7 : f32 to vector<8x512xf32>
    %53 = arith.subf %52, %51 : vector<8x512xf32>
    %c9_i32_8 = arith.constant 9 : i32
    %54 = vector.broadcast %c9_i32_8 : i32 to vector<8x512xi32>
    %55 = arith.shrui %44, %54 : vector<8x512xi32>
    %c1065353216_i32_9 = arith.constant 1065353216 : i32
    %56 = vector.broadcast %c1065353216_i32_9 : i32 to vector<8x512xi32>
    %57 = arith.ori %55, %56 : vector<8x512xi32>
    %58 = tpu.bitcast %57 : vector<8x512xi32> -> vector<8x512xf32>
    %cst_10 = arith.constant 1.000000e+00 : f32
    %59 = vector.broadcast %cst_10 : f32 to vector<8x512xf32>
    %60 = arith.subf %58, %59 : vector<8x512xf32>
    %61 = math.log %53 : vector<8x512xf32>
    %cst_11 = arith.constant -2.000000e+00 : f32
    %62 = vector.broadcast %cst_11 : f32 to vector<8x512xf32>
    %63 = arith.mulf %62, %61 : vector<8x512xf32>
    %64 = math.sqrt %63 : vector<8x512xf32>
    %cst_12 = arith.constant 6.28318548 : f32
    %65 = vector.broadcast %cst_12 : f32 to vector<8x512xf32>
    %66 = arith.mulf %65, %60 : vector<8x512xf32>
    %67 = math.cos %66 : vector<8x512xf32>
    %68 = arith.mulf %64, %67 : vector<8x512xf32>
    %c0_13 = arith.constant 0 : index
    %c0_14 = arith.constant 0 : index
    %69 = vector.load %arg2[%c0_13, %c0_14] : memref<8x1024xf32, #tpu.memory_space<vmem>>, vector<8x512xf32>
    tpu.vector_store %arg2[%c0_13, %c0_14], %68 {strides = array<i32>} : memref<8x1024xf32, #tpu.memory_space<vmem>>, vector<8x512xf32>,
    %70 = math.sin %66 : vector<8x512xf32>
    %71 = arith.mulf %64, %70 : vector<8x512xf32>
    %c0_15 = arith.constant 0 : index
    %c512 = arith.constant 512 : index
    %72 = vector.load %arg2[%c0_15, %c512] : memref<8x1024xf32, #tpu.memory_space<vmem>>, vector<8x512xf32>
    tpu.vector_store %arg2[%c0_15, %c512], %71 {strides = array<i32>} : memref<8x1024xf32, #tpu.memory_space<vmem>>, vector<8x512xf32>,
    return
  }
  func.func @transform_0(%arg0: i32, %arg1: memref<1xi32, #tpu.memory_space<smem>>) -> (i32, i32) {
    %c0_i32 = arith.constant 0 : i32
    %c0_i32_0 = arith.constant 0 : i32
    return %arg0, %c0_i32 : i32, i32
  }
}

</mosaic_0001>

<llo_original>
// kernel: tpu_custom_call.1
$region0: #{tpu_custom_call.1}
  #allocation0 [shape = 'u32[]', space=smem, size = 0x4, offset = 0x4, fixed_abs, tag = 'smem constant byte address 0x4 - core index']
  #allocation1 [shape = 'u32[144,128]{1,0:T(1,128)}', space=vmem, size = 0x12000, scoped, tag = 'internal scratch']
  #allocation2 [shape = 's32[1]{0}', space=sflag, size = 0x4, scoped, tag = 'scoped memory for tpu_custom_call.1']
  #allocation3 [shape = 's32[1]{0:T(128)S(6)}', space=smem, size = 0x200, scoped, tag = 'prefetched SMEM operand 0']
  %s0 = inlined_call_operand.<no memory space> [shape: s32[1], index: 0, kind: input, shape index: {}]
  %s1 = inlined_call_operand.hbm [shape: f32[8,1024], index: 1, kind: output, shape index: {}]
  %s2 = sld [smem:[#allocation0]]
  $region10: #{tpu_custom_call.1} parent=0
    _
  %s4 = ssub.s32 1, %s2
  %s5 = scalar_select 0, %s4, %s2
  %6 = sst [smem:[#allocation3]] %s0
  $region1: #{tpu_custom_call.1} parent=0
    #allocation4 [shape = 'u8[32768]{0}', space=vmem, size = 0x8000, scoped, tag = 'output window, operand 0, single buffered']
    #allocation5 [shape = 's32[1]{0}', space=sflag, size = 0x4, scoped, tag = 'scoped memory for tpu_custom_call.1']
    %7 = vsyncpa [#allocation5], 0
    %s8 = sld [smem:[#allocation3]]
    %v9 = vlaneseq
    %v10 = vshrl.u32 %v9, 7
    %v11 = vlaneseq
    %v12 = vand.u32 %v11, 127
    %v13 = vadd.s32 %v12, 128
    %v14 = vadd.s32 %v12, 256
    %v15 = vadd.s32 %v12, 384
    %v16 = vmul.u32 %v10, 512
    %v17 = vadd.s32 %v16, %v12
    %v18 = vadd.s32 %v16, %v13
    %v19 = vadd.s32 %v16, %v14
    %v20 = vadd.s32 %v16, %v15
    %s21 = smul.u32 0, 4096
    %v22 = vstv %s21
    %v23 = vadd.s32 %v17, %v22
    %v24 = vadd.s32 %v18, %v22
    %v25 = vadd.s32 %v19, %v22
    %v26 = vadd.s32 %v20, %v22
    %s27 = smul.u32 %s8, 2654435769
    %s28 = sadd.s32 %s27, 2246822507
    %v29 = vmul.u32 %v23, 2654435769
    %v30 = vmul.u32 %v24, 2654435769
    %v31 = vmul.u32 %v25, 2654435769
    %v32 = vmul.u32 %v26, 2654435769
    %v33 = vstv %s28
    %v34 = vadd.s32 %v29, %v33
    %v35 = vadd.s32 %v30, %v33
    %v36 = vadd.s32 %v31, %v33
    %v37 = vadd.s32 %v32, %v33
    %v38 = vxor.u32 %v34, 1759714724
    %v39 = vxor.u32 %v35, 1759714724
    %v40 = vxor.u32 %v36, 1759714724
    %v41 = vxor.u32 %v37, 1759714724
    %v42 = vshrl.u32 %v38, 16
    %v43 = vshrl.u32 %v39, 16
    %v44 = vshrl.u32 %v40, 16
    %v45 = vshrl.u32 %v41, 16
    %v46 = vxor.u32 %v38, %v42
    %v47 = vxor.u32 %v39, %v43
    %v48 = vxor.u32 %v40, %v44
    %v49 = vxor.u32 %v41, %v45
    %v50 = vmul.u32 %v46, 2146121005
    %v51 = vmul.u32 %v47, 2146121005
    %v52 = vmul.u32 %v48, 2146121005
    %v53 = vmul.u32 %v49, 2146121005
    %v54 = vshrl.u32 %v50, 15
    %v55 = vshrl.u32 %v51, 15
    %v56 = vshrl.u32 %v52, 15
    %v57 = vshrl.u32 %v53, 15
    %v58 = vxor.u32 %v50, %v54
    %v59 = vxor.u32 %v51, %v55
    %v60 = vxor.u32 %v52, %v56
    %v61 = vxor.u32 %v53, %v57
    %v62 = vmul.u32 %v58, 2221713035
    %v63 = vmul.u32 %v59, 2221713035
    %v64 = vmul.u32 %v60, 2221713035
    %v65 = vmul.u32 %v61, 2221713035
    %v66 = vshrl.u32 %v62, 16
    %v67 = vshrl.u32 %v63, 16
    %v68 = vshrl.u32 %v64, 16
    %v69 = vshrl.u32 %v65, 16
    %v70 = vxor.u32 %v62, %v66
    %v71 = vxor.u32 %v63, %v67
    %v72 = vxor.u32 %v64, %v68
    %v73 = vxor.u32 %v65, %v69
    %v74 = vxor.u32 %v34, 3039394381
    %v75 = vxor.u32 %v35, 3039394381
    %v76 = vxor.u32 %v36, 3039394381
    %v77 = vxor.u32 %v37, 3039394381
    %v78 = vshrl.u32 %v74, 16
    %v79 = vshrl.u32 %v75, 16
    %v80 = vshrl.u32 %v76, 16
    %v81 = vshrl.u32 %v77, 16
    %v82 = vxor.u32 %v74, %v78
    %v83 = vxor.u32 %v75, %v79
    %v84 = vxor.u32 %v76, %v80
    %v85 = vxor.u32 %v77, %v81
    %v86 = vmul.u32 %v82, 2146121005
    %v87 = vmul.u32 %v83, 2146121005
    %v88 = vmul.u32 %v84, 2146121005
    %v89 = vmul.u32 %v85, 2146121005
    %v90 = vshrl.u32 %v86, 15
    %v91 = vshrl.u32 %v87, 15
    %v92 = vshrl.u32 %v88, 15
    %v93 = vshrl.u32 %v89, 15
    %v94 = vxor.u32 %v86, %v90
    %v95 = vxor.u32 %v87, %v91
    %v96 = vxor.u32 %v88, %v92
    %v97 = vxor.u32 %v89, %v93
    %v98 = vmul.u32 %v94, 2221713035
    %v99 = vmul.u32 %v95, 2221713035
    %v100 = vmul.u32 %v96, 2221713035
    %v101 = vmul.u32 %v97, 2221713035
    %v102 = vshrl.u32 %v98, 16
    %v103 = vshrl.u32 %v99, 16
    %v104 = vshrl.u32 %v100, 16
    %v105 = vshrl.u32 %v101, 16
    %v106 = vxor.u32 %v98, %v102
    %v107 = vxor.u32 %v99, %v103
    %v108 = vxor.u32 %v100, %v104
    %v109 = vxor.u32 %v101, %v105
    %v110 = vshrl.u32 %v70, 9
    %v111 = vshrl.u32 %v71, 9
    %v112 = vshrl.u32 %v72, 9
    %v113 = vshrl.u32 %v73, 9
    %v114 = vor.u32 %v110, 1065353216
    %v115 = vor.u32 %v111, 1065353216
    %v116 = vor.u32 %v112, 1065353216
    %v117 = vor.u32 %v113, 1065353216
    %v122 = vsub.f32 %v114, 1.0
    %v123 = vsub.f32 %v115, 1.0
    %v124 = vsub.f32 %v116, 1.0
    %v125 = vsub.f32 %v117, 1.0
    %v126 = vsub.f32 1.0, %v122
    %v127 = vsub.f32 1.0, %v123
    %v128 = vsub.f32 1.0, %v124
    %v129 = vsub.f32 1.0, %v125
    %v130 = vshrl.u32 %v106, 9
    %v131 = vshrl.u32 %v107, 9
    %v132 = vshrl.u32 %v108, 9
    %v133 = vshrl.u32 %v109, 9
    %v134 = vor.u32 %v130, 1065353216
    %v135 = vor.u32 %v131, 1065353216
    %v136 = vor.u32 %v132, 1065353216
    %v137 = vor.u32 %v133, 1065353216
    %v142 = vsub.f32 %v134, 1.0
    %v143 = vsub.f32 %v135, 1.0
    %v144 = vsub.f32 %v136, 1.0
    %v145 = vsub.f32 %v137, 1.0
    %v146 = vlog2.pop %v126
    %v147 = vmul.f32 %v146, 0.6931472
    %v148 = vlog2.pop %v127
    %v149 = vmul.f32 %v148, 0.6931472
    %v150 = vlog2.pop %v128
    %v151 = vmul.f32 %v150, 0.6931472
    %v152 = vlog2.pop %v129
    %v153 = vmul.f32 %v152, 0.6931472
    %v154 = vmul.f32 %v147, -2.0
    %v155 = vmul.f32 %v149, -2.0
    %v156 = vmul.f32 %v151, -2.0
    %v157 = vmul.f32 %v153, -2.0
    %v158 = vrsqrt.pop %v154
    %v159 = vmul.f32 %v154, %v158
    %vm160 = vcmp.eq.f32.partialorder %v154, inf
    %v161 = vsel %vm160, %v154, %v159
    %vm162 = vcmp.eq.f32.partialorder %v154, 0.0
    %v163 = vand.u32 %v154, 2147483648
    %v164 = vsel %vm162, %v163, %v161
    %v165 = vrsqrt.pop %v155
    %v166 = vmul.f32 %v155, %v165
    %vm167 = vcmp.eq.f32.partialorder %v155, inf
    %v168 = vsel %vm167, %v155, %v166
    %vm169 = vcmp.eq.f32.partialorder %v155, 0.0
    %v170 = vand.u32 %v155, 2147483648
    %v171 = vsel %vm169, %v170, %v168
    %v172 = vrsqrt.pop %v156
    %v173 = vmul.f32 %v156, %v172
    %vm174 = vcmp.eq.f32.partialorder %v156, inf
    %v175 = vsel %vm174, %v156, %v173
    %vm176 = vcmp.eq.f32.partialorder %v156, 0.0
    %v177 = vand.u32 %v156, 2147483648
    %v178 = vsel %vm176, %v177, %v175
    %v179 = vrsqrt.pop %v157
    %v180 = vmul.f32 %v157, %v179
    %vm181 = vcmp.eq.f32.partialorder %v157, inf
    %v182 = vsel %vm181, %v157, %v180
    %vm183 = vcmp.eq.f32.partialorder %v157, 0.0
    %v184 = vand.u32 %v157, 2147483648
    %v185 = vsel %vm183, %v184, %v182
    %v186 = vmul.f32 %v142, 6.2831855
    %v187 = vmul.f32 %v143, 6.2831855
    %v188 = vmul.f32 %v144, 6.2831855
    %v189 = vmul.f32 %v145, 6.2831855
    %v190 = vand.u32 2147483647, %v186
    %vm191 = vcmp.le.f32.partialorder %v190, 0.7853982
    %vm192 = vcmp.lt.s32.totalorder %v186, 0
    %v193 = vand.u32 %v186, 2139095040
    %v194 = vshrl.u32 %v193, 23
    %v195 = vsub.s32 %v194, 127
    %v196 = vand.u32 2147483647, %v186
    %v197 = vand.u32 %v196, 8388607
    %v198 = vor.u32 %v197, 8388608
    %v199 = vsub.s32 0, %v198
    %v200 = vadd.s32 %v195, 1
    %vm201 = vcmp.gt.s32.totalorder %v200, 0
    %v202 = vsel %vm201, %v200, 0
    %v203 = vshrl.u32 %v202, 5
    %v204 = vand.u32 %v202, 31
    %v205 = vsub.s32 32, %v204
    %v206 = vshrl.u32 683565275, %v205
    %v207 = vshll.u32 683565275, %v204
    %v208 = vshrl.u32 2475754826, %v205
    %v209 = vor.u32 %v207, %v208
    %v210 = vshll.u32 2475754826, %v204
    %v211 = vshrl.u32 2131351028, %v205
    %v212 = vor.u32 %v210, %v211
    %v213 = vshll.u32 2131351028, %v204
    %v214 = vshrl.u32 2102212464, %v205
    %v215 = vor.u32 %v213, %v214
    %v216 = vshll.u32 2102212464, %v204
    %v217 = vshrl.u32 920167782, %v205
    %v218 = vor.u32 %v216, %v217
    %v219 = vshll.u32 920167782, %v204
    %v220 = vshrl.u32 1326507024, %v205
    %v221 = vor.u32 %v219, %v220
    %vm222 = vcmp.lt.s32.totalorder %v203, 1
    %vm223 = vcmp.lt.s32.totalorder %v203, 2
    %vm224 = vcmp.lt.s32.totalorder %v203, 3
    %vm225 = vcmp.lt.s32.totalorder %v203, 4
    %v226 = vsel %vm222, %v206, %v209
    %v227 = vsel %vm225, %v215, 2102212464
    %v228 = vsel %vm224, %v212, %v227
    %v229 = vsel %vm223, %v226, %v228
    %v230 = vsel %vm222, %v209, %v212
    %v231 = vsel %vm225, %v218, 920167782
    %v232 = vsel %vm224, %v215, %v231
    %v233 = vsel %vm223, %v230, %v232
    %v234 = vsel %vm222, %v212, %v215
    %v235 = vsel %vm225, %v221, 1326507024
    %v236 = vsel %vm224, %v218, %v235
    %v237 = vsel %vm223, %v234, %v236
    %v238 = vshll.u32 %v198, 8
    %v239 = vmul.u32.u64.compose %v238, %v237
    %v240 = vextract.low.u32 %v239
    %v241 = vextract.high.u32 %v239
    %v242 = vmul.u32.u64.compose %v238, %v233
    %v243 = vextract.low.u32 %v242
    %v244 = vextract.high.u32 %v242
    %v245 = vmul.u32 %v238, %v229
    %v246 = vadd.s32 %v241, %v243
    %vm247 = vc.u32 %v241, %v243
    %v248 = vadd.s32 %v244, 1
    %v249 = vsel %vm247, %v248, %v244
    %v250 = vadd.s32 %v245, %v249
    %v251 = vadd.s32 %v250, 536870912
    %v252 = vshrl.u32 %v251, 30
    %v253 = vshll.u32 %v252, 30
    %v254 = vsub.s32 %v250, %v253
    %vm255 = vcmp.lt.s32.totalorder %v254, 0
    %v256 = vsub.s32 0, %v254
    %v257 = vsel %vm255, %v256, %v254
    %v258 = vclz %v257
    %v259 = vsub.s32 %v258, 2
    %vm260 = vcmp.gt.s32.totalorder 0, %v259
    %v261 = vsel %vm260, 0, %v259
    %v262 = vsub.s32 32, %v261
    %v263 = vshll.u32 %v254, %v261
    %v264 = vshrl.u32 %v246, %v262
    %v265 = vor.u32 %v263, %v264
    %v266 = vsub.s32 4294967266, %v261
    %v267 = vadd.s32 %v266, 127
    %v268 = vshll.u32 %v267, 23
    %v269 = vor.u32 4788187, %v268
    %v270 = vand.u32 2147483647, %v269
    %v272 = vcvt.s32.f32 %v265
    %v273 = vmul.f32 %v272, %v270
    %v274 = vxor.u32 %v273, 2147483648
    %v275 = vsel %vm192, %v274, %v273
    %v276 = vsub.s32 4, %v252
    %v277 = vsel %vm192, %v276, %v252
    %v278 = vsel %vm191, %v186, %v275
    %v279 = vsel %vm191, 0, %v277
    %v280 = vcosq.f32.pop %v278
    %v281 = vsinq.f32.pop %v278
    %vm282 = vweird.f32 %v186
    %v283 = vand.u32 %v279, 3
    %vm284 = vcmp.lt.s32.totalorder %v283, 2
    %vm285 = vcmp.eq.s32.totalorder %v283, 0
    %v286 = vxor.u32 %v281, 2147483648
    %v287 = vsel %vm285, %v280, %v286
    %vm288 = vcmp.eq.s32.totalorder %v283, 2
    %v289 = vxor.u32 %v280, 2147483648
    %v290 = vsel %vm288, %v289, %v281
    %v291 = vsel %vm284, %v287, %v290
    %v292 = vsel %vm282, nan, %v291
    %v293 = vand.u32 2147483647, %v187
    %vm294 = vcmp.le.f32.partialorder %v293, 0.7853982
    %vm295 = vcmp.lt.s32.totalorder %v187, 0
    %v296 = vand.u32 %v187, 2139095040
    %v297 = vshrl.u32 %v296, 23
    %v298 = vsub.s32 %v297, 127
    %v299 = vand.u32 2147483647, %v187
    %v300 = vand.u32 %v299, 8388607
    %v301 = vor.u32 %v300, 8388608
    %v302 = vsub.s32 0, %v301
    %v303 = vadd.s32 %v298, 1
    %vm304 = vcmp.gt.s32.totalorder %v303, 0
    %v305 = vsel %vm304, %v303, 0
    %v306 = vshrl.u32 %v305, 5
    %v307 = vand.u32 %v305, 31
    %v308 = vsub.s32 32, %v307
    %v309 = vshrl.u32 683565275, %v308
    %v310 = vshll.u32 683565275, %v307
    %v311 = vshrl.u32 2475754826, %v308
    %v312 = vor.u32 %v310, %v311
    %v313 = vshll.u32 2475754826, %v307
    %v314 = vshrl.u32 2131351028, %v308
    %v315 = vor.u32 %v313, %v314
    %v316 = vshll.u32 2131351028, %v307
    %v317 = vshrl.u32 2102212464, %v308
    %v318 = vor.u32 %v316, %v317
    %v319 = vshll.u32 2102212464, %v307
    %v320 = vshrl.u32 920167782, %v308
    %v321 = vor.u32 %v319, %v320
    %v322 = vshll.u32 920167782, %v307
    %v323 = vshrl.u32 1326507024, %v308
    %v324 = vor.u32 %v322, %v323
    %vm325 = vcmp.lt.s32.totalorder %v306, 1
    %vm326 = vcmp.lt.s32.totalorder %v306, 2
    %vm327 = vcmp.lt.s32.totalorder %v306, 3
    %vm328 = vcmp.lt.s32.totalorder %v306, 4
    %v329 = vsel %vm325, %v309, %v312
    %v330 = vsel %vm328, %v318, 2102212464
    %v331 = vsel %vm327, %v315, %v330
    %v332 = vsel %vm326, %v329, %v331
    %v333 = vsel %vm325, %v312, %v315
    %v334 = vsel %vm328, %v321, 920167782
    %v335 = vsel %vm327, %v318, %v334
    %v336 = vsel %vm326, %v333, %v335
    %v337 = vsel %vm325, %v315, %v318
    %v338 = vsel %vm328, %v324, 1326507024
    %v339 = vsel %vm327, %v321, %v338
    %v340 = vsel %vm326, %v337, %v339
    %v341 = vshll.u32 %v301, 8
    %v342 = vmul.u32.u64.compose %v341, %v340
    %v343 = vextract.low.u32 %v342
    %v344 = vextract.high.u32 %v342
    %v345 = vmul.u32.u64.compose %v341, %v336
    %v346 = vextract.low.u32 %v345
    %v347 = vextract.high.u32 %v345
    %v348 = vmul.u32 %v341, %v332
    %v349 = vadd.s32 %v344, %v346
    %vm350 = vc.u32 %v344, %v346
    %v351 = vadd.s32 %v347, 1
    %v352 = vsel %vm350, %v351, %v347
    %v353 = vadd.s32 %v348, %v352
    %v354 = vadd.s32 %v353, 536870912
    %v355 = vshrl.u32 %v354, 30
    %v356 = vshll.u32 %v355, 30
    %v357 = vsub.s32 %v353, %v356
    %vm358 = vcmp.lt.s32.totalorder %v357, 0
    %v359 = vsub.s32 0, %v357
    %v360 = vsel %vm358, %v359, %v357
    %v361 = vclz %v360
    %v362 = vsub.s32 %v361, 2
    %vm363 = vcmp.gt.s32.totalorder 0, %v362
    %v364 = vsel %vm363, 0, %v362
    %v365 = vsub.s32 32, %v364
    %v366 = vshll.u32 %v357, %v364
    %v367 = vshrl.u32 %v349, %v365
    %v368 = vor.u32 %v366, %v367
    %v369 = vsub.s32 4294967266, %v364
    %v370 = vadd.s32 %v369, 127
    %v371 = vshll.u32 %v370, 23
    %v372 = vor.u32 4788187, %v371
    %v373 = vand.u32 2147483647, %v372
    %v375 = vcvt.s32.f32 %v368
    %v376 = vmul.f32 %v375, %v373
    %v377 = vxor.u32 %v376, 2147483648
    %v378 = vsel %vm295, %v377, %v376
    %v379 = vsub.s32 4, %v355
    %v380 = vsel %vm295, %v379, %v355
    %v381 = vsel %vm294, %v187, %v378
    %v382 = vsel %vm294, 0, %v380
    %v383 = vcosq.f32.pop %v381
    %v384 = vsinq.f32.pop %v381
    %vm385 = vweird.f32 %v187
    %v386 = vand.u32 %v382, 3
    %vm387 = vcmp.lt.s32.totalorder %v386, 2
    %vm388 = vcmp.eq.s32.totalorder %v386, 0
    %v389 = vxor.u32 %v384, 2147483648
    %v390 = vsel %vm388, %v383, %v389
    %vm391 = vcmp.eq.s32.totalorder %v386, 2
    %v392 = vxor.u32 %v383, 2147483648
    %v393 = vsel %vm391, %v392, %v384
    %v394 = vsel %vm387, %v390, %v393
    %v395 = vsel %vm385, nan, %v394
    %v396 = vand.u32 2147483647, %v188
    %vm397 = vcmp.le.f32.partialorder %v396, 0.7853982
    %vm398 = vcmp.lt.s32.totalorder %v188, 0
    %v399 = vand.u32 %v188, 2139095040
    %v400 = vshrl.u32 %v399, 23
    %v401 = vsub.s32 %v400, 127
    %v402 = vand.u32 2147483647, %v188
    %v403 = vand.u32 %v402, 8388607
    %v404 = vor.u32 %v403, 8388608
    %v405 = vsub.s32 0, %v404
    %v406 = vadd.s32 %v401, 1
    %vm407 = vcmp.gt.s32.totalorder %v406, 0
    %v408 = vsel %vm407, %v406, 0
    %v409 = vshrl.u32 %v408, 5
    %v410 = vand.u32 %v408, 31
    %v411 = vsub.s32 32, %v410
    %v412 = vshrl.u32 683565275, %v411
    %v413 = vshll.u32 683565275, %v410
    %v414 = vshrl.u32 2475754826, %v411
    %v415 = vor.u32 %v413, %v414
    %v416 = vshll.u32 2475754826, %v410
    %v417 = vshrl.u32 2131351028, %v411
    %v418 = vor.u32 %v416, %v417
    %v419 = vshll.u32 2131351028, %v410
    %v420 = vshrl.u32 2102212464, %v411
    %v421 = vor.u32 %v419, %v420
    %v422 = vshll.u32 2102212464, %v410
    %v423 = vshrl.u32 920167782, %v411
    %v424 = vor.u32 %v422, %v423
    %v425 = vshll.u32 920167782, %v410
    %v426 = vshrl.u32 1326507024, %v411
    %v427 = vor.u32 %v425, %v426
    %vm428 = vcmp.lt.s32.totalorder %v409, 1
    %vm429 = vcmp.lt.s32.totalorder %v409, 2
    %vm430 = vcmp.lt.s32.totalorder %v409, 3
    %vm431 = vcmp.lt.s32.totalorder %v409, 4
    %v432 = vsel %vm428, %v412, %v415
    %v433 = vsel %vm431, %v421, 2102212464
    %v434 = vsel %vm430, %v418, %v433
    %v435 = vsel %vm429, %v432, %v434
    %v436 = vsel %vm428, %v415, %v418
    %v437 = vsel %vm431, %v424, 920167782
    %v438 = vsel %vm430, %v421, %v437
    %v439 = vsel %vm429, %v436, %v438
    %v440 = vsel %vm428, %v418, %v421
    %v441 = vsel %vm431, %v427, 1326507024
    %v442 = vsel %vm430, %v424, %v441
    %v443 = vsel %vm429, %v440, %v442
    %v444 = vshll.u32 %v404, 8
    %v445 = vmul.u32.u64.compose %v444, %v443
    %v446 = vextract.low.u32 %v445
    %v447 = vextract.high.u32 %v445
    %v448 = vmul.u32.u64.compose %v444, %v439
    %v449 = vextract.low.u32 %v448
    %v450 = vextract.high.u32 %v448
    %v451 = vmul.u32 %v444, %v435
    %v452 = vadd.s32 %v447, %v449
    %vm453 = vc.u32 %v447, %v449
    %v454 = vadd.s32 %v450, 1
    %v455 = vsel %vm453, %v454, %v450
    %v456 = vadd.s32 %v451, %v455
    %v457 = vadd.s32 %v456, 536870912
    %v458 = vshrl.u32 %v457, 30
    %v459 = vshll.u32 %v458, 30
    %v460 = vsub.s32 %v456, %v459
    %vm461 = vcmp.lt.s32.totalorder %v460, 0
    %v462 = vsub.s32 0, %v460
    %v463 = vsel %vm461, %v462, %v460
    %v464 = vclz %v463
    %v465 = vsub.s32 %v464, 2
    %vm466 = vcmp.gt.s32.totalorder 0, %v465
    %v467 = vsel %vm466, 0, %v465
    %v468 = vsub.s32 32, %v467
    %v469 = vshll.u32 %v460, %v467
    %v470 = vshrl.u32 %v452, %v468
    %v471 = vor.u32 %v469, %v470
    %v472 = vsub.s32 4294967266, %v467
    %v473 = vadd.s32 %v472, 127
    %v474 = vshll.u32 %v473, 23
    %v475 = vor.u32 4788187, %v474
    %v476 = vand.u32 2147483647, %v475
    %v478 = vcvt.s32.f32 %v471
    %v479 = vmul.f32 %v478, %v476
    %v480 = vxor.u32 %v479, 2147483648
    %v481 = vsel %vm398, %v480, %v479
    %v482 = vsub.s32 4, %v458
    %v483 = vsel %vm398, %v482, %v458
    %v484 = vsel %vm397, %v188, %v481
    %v485 = vsel %vm397, 0, %v483
    %v486 = vcosq.f32.pop %v484
    %v487 = vsinq.f32.pop %v484
    %vm488 = vweird.f32 %v188
    %v489 = vand.u32 %v485, 3
    %vm490 = vcmp.lt.s32.totalorder %v489, 2
    %vm491 = vcmp.eq.s32.totalorder %v489, 0
    %v492 = vxor.u32 %v487, 2147483648
    %v493 = vsel %vm491, %v486, %v492
    %vm494 = vcmp.eq.s32.totalorder %v489, 2
    %v495 = vxor.u32 %v486, 2147483648
    %v496 = vsel %vm494, %v495, %v487
    %v497 = vsel %vm490, %v493, %v496
    %v498 = vsel %vm488, nan, %v497
    %v499 = vand.u32 2147483647, %v189
    %vm500 = vcmp.le.f32.partialorder %v499, 0.7853982
    %vm501 = vcmp.lt.s32.totalorder %v189, 0
    %v502 = vand.u32 %v189, 2139095040
    %v503 = vshrl.u32 %v502, 23
    %v504 = vsub.s32 %v503, 127
    %v505 = vand.u32 2147483647, %v189
    %v506 = vand.u32 %v505, 8388607
    %v507 = vor.u32 %v506, 8388608
    %v508 = vsub.s32 0, %v507
    %v509 = vadd.s32 %v504, 1
    %vm510 = vcmp.gt.s32.totalorder %v509, 0
    %v511 = vsel %vm510, %v509, 0
    %v512 = vshrl.u32 %v511, 5
    %v513 = vand.u32 %v511, 31
    %v514 = vsub.s32 32, %v513
    %v515 = vshrl.u32 683565275, %v514
    %v516 = vshll.u32 683565275, %v513
    %v517 = vshrl.u32 2475754826, %v514
    %v518 = vor.u32 %v516, %v517
    %v519 = vshll.u32 2475754826, %v513
    %v520 = vshrl.u32 2131351028, %v514
    %v521 = vor.u32 %v519, %v520
    %v522 = vshll.u32 2131351028, %v513
    %v523 = vshrl.u32 2102212464, %v514
    %v524 = vor.u32 %v522, %v523
    %v525 = vshll.u32 2102212464, %v513
    %v526 = vshrl.u32 920167782, %v514
    %v527 = vor.u32 %v525, %v526
    %v528 = vshll.u32 920167782, %v513
    %v529 = vshrl.u32 1326507024, %v514
    %v530 = vor.u32 %v528, %v529
    %vm531 = vcmp.lt.s32.totalorder %v512, 1
    %vm532 = vcmp.lt.s32.totalorder %v512, 2
    %vm533 = vcmp.lt.s32.totalorder %v512, 3
    %vm534 = vcmp.lt.s32.totalorder %v512, 4
    %v535 = vsel %vm531, %v515, %v518
    %v536 = vsel %vm534, %v524, 2102212464
    %v537 = vsel %vm533, %v521, %v536
    %v538 = vsel %vm532, %v535, %v537
    %v539 = vsel %vm531, %v518, %v521
    %v540 = vsel %vm534, %v527, 920167782
    %v541 = vsel %vm533, %v524, %v540
    %v542 = vsel %vm532, %v539, %v541
    %v543 = vsel %vm531, %v521, %v524
    %v544 = vsel %vm534, %v530, 1326507024
    %v545 = vsel %vm533, %v527, %v544
    %v546 = vsel %vm532, %v543, %v545
    %v547 = vshll.u32 %v507, 8
    %v548 = vmul.u32.u64.compose %v547, %v546
    %v549 = vextract.low.u32 %v548
    %v550 = vextract.high.u32 %v548
    %v551 = vmul.u32.u64.compose %v547, %v542
    %v552 = vextract.low.u32 %v551
    %v553 = vextract.high.u32 %v551
    %v554 = vmul.u32 %v547, %v538
    %v555 = vadd.s32 %v550, %v552
    %vm556 = vc.u32 %v550, %v552
    %v557 = vadd.s32 %v553, 1
    %v558 = vsel %vm556, %v557, %v553
    %v559 = vadd.s32 %v554, %v558
    %v560 = vadd.s32 %v559, 536870912
    %v561 = vshrl.u32 %v560, 30
    %v562 = vshll.u32 %v561, 30
    %v563 = vsub.s32 %v559, %v562
    %vm564 = vcmp.lt.s32.totalorder %v563, 0
    %v565 = vsub.s32 0, %v563
    %v566 = vsel %vm564, %v565, %v563
    %v567 = vclz %v566
    %v568 = vsub.s32 %v567, 2
    %vm569 = vcmp.gt.s32.totalorder 0, %v568
    %v570 = vsel %vm569, 0, %v568
    %v571 = vsub.s32 32, %v570
    %v572 = vshll.u32 %v563, %v570
    %v573 = vshrl.u32 %v555, %v571
    %v574 = vor.u32 %v572, %v573
    %v575 = vsub.s32 4294967266, %v570
    %v576 = vadd.s32 %v575, 127
    %v577 = vshll.u32 %v576, 23
    %v578 = vor.u32 4788187, %v577
    %v579 = vand.u32 2147483647, %v578
    %v581 = vcvt.s32.f32 %v574
    %v582 = vmul.f32 %v581, %v579
    %v583 = vxor.u32 %v582, 2147483648
    %v584 = vsel %vm501, %v583, %v582
    %v585 = vsub.s32 4, %v561
    %v586 = vsel %vm501, %v585, %v561
    %v587 = vsel %vm500, %v189, %v584
    %v588 = vsel %vm500, 0, %v586
    %v589 = vcosq.f32.pop %v587
    %v590 = vsinq.f32.pop %v587
    %vm591 = vweird.f32 %v189
    %v592 = vand.u32 %v588, 3
    %vm593 = vcmp.lt.s32.totalorder %v592, 2
    %vm594 = vcmp.eq.s32.totalorder %v592, 0
    %v595 = vxor.u32 %v590, 2147483648
    %v596 = vsel %vm594, %v589, %v595
    %vm597 = vcmp.eq.s32.totalorder %v592, 2
    %v598 = vxor.u32 %v589, 2147483648
    %v599 = vsel %vm597, %v598, %v590
    %v600 = vsel %vm593, %v596, %v599
    %v601 = vsel %vm591, nan, %v600
    %v602 = vmul.f32 %v164, %v292
    %v603 = vmul.f32 %v171, %v395
    %v604 = vmul.f32 %v178, %v498
    %v605 = vmul.f32 %v185, %v601
    %606 = vst [vmem:[#allocation4] sm:$0xff] %v602
    %607 = vst [vmem:[#allocation4 + $0x8] sm:$0xff] %v603
    %608 = vst [vmem:[#allocation4 + $0x10] sm:$0xff] %v604
    %609 = vst [vmem:[#allocation4 + $0x18] sm:$0xff] %v605
    %v610 = vand.u32 2147483647, %v186
    %vm611 = vcmp.le.f32.partialorder %v610, 0.7853982
    %vm612 = vcmp.lt.s32.totalorder %v186, 0
    %v613 = vand.u32 %v186, 2139095040
    %v614 = vshrl.u32 %v613, 23
    %v615 = vsub.s32 %v614, 127
    %v616 = vand.u32 2147483647, %v186
    %v617 = vand.u32 %v616, 8388607
    %v618 = vor.u32 %v617, 8388608
    %v619 = vsub.s32 0, %v618
    %v620 = vadd.s32 %v615, 1
    %vm621 = vcmp.gt.s32.totalorder %v620, 0
    %v622 = vsel %vm621, %v620, 0
    %v623 = vshrl.u32 %v622, 5
    %v624 = vand.u32 %v622, 31
    %v625 = vsub.s32 32, %v624
    %v626 = vshrl.u32 683565275, %v625
    %v627 = vshll.u32 683565275, %v624
    %v628 = vshrl.u32 2475754826, %v625
    %v629 = vor.u32 %v627, %v628
    %v630 = vshll.u32 2475754826, %v624
    %v631 = vshrl.u32 2131351028, %v625
    %v632 = vor.u32 %v630, %v631
    %v633 = vshll.u32 2131351028, %v624
    %v634 = vshrl.u32 2102212464, %v625
    %v635 = vor.u32 %v633, %v634
    %v636 = vshll.u32 2102212464, %v624
    %v637 = vshrl.u32 920167782, %v625
    %v638 = vor.u32 %v636, %v637
    %v639 = vshll.u32 920167782, %v624
    %v640 = vshrl.u32 1326507024, %v625
    %v641 = vor.u32 %v639, %v640
    %vm642 = vcmp.lt.s32.totalorder %v623, 1
    %vm643 = vcmp.lt.s32.totalorder %v623, 2
    %vm644 = vcmp.lt.s32.totalorder %v623, 3
    %vm645 = vcmp.lt.s32.totalorder %v623, 4
    %v646 = vsel %vm642, %v626, %v629
    %v647 = vsel %vm645, %v635, 2102212464
    %v648 = vsel %vm644, %v632, %v647
    %v649 = vsel %vm643, %v646, %v648
    %v650 = vsel %vm642, %v629, %v632
    %v651 = vsel %vm645, %v638, 920167782
    %v652 = vsel %vm644, %v635, %v651
    %v653 = vsel %vm643, %v650, %v652
    %v654 = vsel %vm642, %v632, %v635
    %v655 = vsel %vm645, %v641, 1326507024
    %v656 = vsel %vm644, %v638, %v655
    %v657 = vsel %vm643, %v654, %v656
    %v658 = vshll.u32 %v618, 8
    %v659 = vmul.u32.u64.compose %v658, %v657
    %v660 = vextract.low.u32 %v659
    %v661 = vextract.high.u32 %v659
    %v662 = vmul.u32.u64.compose %v658, %v653
    %v663 = vextract.low.u32 %v662
    %v664 = vextract.high.u32 %v662
    %v665 = vmul.u32 %v658, %v649
    %v666 = vadd.s32 %v661, %v663
    %vm667 = vc.u32 %v661, %v663
    %v668 = vadd.s32 %v664, 1
    %v669 = vsel %vm667, %v668, %v664
    %v670 = vadd.s32 %v665, %v669
    %v671 = vadd.s32 %v670, 536870912
    %v672 = vshrl.u32 %v671, 30
    %v673 = vshll.u32 %v672, 30
    %v674 = vsub.s32 %v670, %v673
    %vm675 = vcmp.lt.s32.totalorder %v674, 0
    %v676 = vsub.s32 0, %v674
    %v677 = vsel %vm675, %v676, %v674
    %v678 = vclz %v677
    %v679 = vsub.s32 %v678, 2
    %vm680 = vcmp.gt.s32.totalorder 0, %v679
    %v681 = vsel %vm680, 0, %v679
    %v682 = vsub.s32 32, %v681
    %v683 = vshll.u32 %v674, %v681
    %v684 = vshrl.u32 %v666, %v682
    %v685 = vor.u32 %v683, %v684
    %v686 = vsub.s32 4294967266, %v681
    %v687 = vadd.s32 %v686, 127
    %v688 = vshll.u32 %v687, 23
    %v689 = vor.u32 4788187, %v688
    %v690 = vand.u32 2147483647, %v689
    %v692 = vcvt.s32.f32 %v685
    %v693 = vmul.f32 %v692, %v690
    %v694 = vxor.u32 %v693, 2147483648
    %v695 = vsel %vm612, %v694, %v693
    %v696 = vsub.s32 4, %v672
    %v697 = vsel %vm612, %v696, %v672
    %v698 = vsel %vm611, %v186, %v695
    %v699 = vsel %vm611, 0, %v697
    %v700 = vcosq.f32.pop %v698
    %v701 = vsinq.f32.pop %v698
    %vm702 = vweird.f32 %v186
    %v703 = vadd.s32 %v699, 3
    %v704 = vand.u32 %v703, 3
    %vm705 = vcmp.lt.s32.totalorder %v704, 2
    %vm706 = vcmp.eq.s32.totalorder %v704, 0
    %v707 = vxor.u32 %v701, 2147483648
    %v708 = vsel %vm706, %v700, %v707
    %vm709 = vcmp.eq.s32.totalorder %v704, 2
    %v710 = vxor.u32 %v700, 2147483648
    %v711 = vsel %vm709, %v710, %v701
    %v712 = vsel %vm705, %v708, %v711
    %v713 = vsel %vm702, nan, %v712
    %v714 = vand.u32 2147483647, %v187
    %vm715 = vcmp.le.f32.partialorder %v714, 0.7853982
    %vm716 = vcmp.lt.s32.totalorder %v187, 0
    %v717 = vand.u32 %v187, 2139095040
    %v718 = vshrl.u32 %v717, 23
    %v719 = vsub.s32 %v718, 127
    %v720 = vand.u32 2147483647, %v187
    %v721 = vand.u32 %v720, 8388607
    %v722 = vor.u32 %v721, 8388608
    %v723 = vsub.s32 0, %v722
    %v724 = vadd.s32 %v719, 1
    %vm725 = vcmp.gt.s32.totalorder %v724, 0
    %v726 = vsel %vm725, %v724, 0
    %v727 = vshrl.u32 %v726, 5
    %v728 = vand.u32 %v726, 31
    %v729 = vsub.s32 32, %v728
    %v730 = vshrl.u32 683565275, %v729
    %v731 = vshll.u32 683565275, %v728
    %v732 = vshrl.u32 2475754826, %v729
    %v733 = vor.u32 %v731, %v732
    %v734 = vshll.u32 2475754826, %v728
    %v735 = vshrl.u32 2131351028, %v729
    %v736 = vor.u32 %v734, %v735
    %v737 = vshll.u32 2131351028, %v728
    %v738 = vshrl.u32 2102212464, %v729
    %v739 = vor.u32 %v737, %v738
    %v740 = vshll.u32 2102212464, %v728
    %v741 = vshrl.u32 920167782, %v729
    %v742 = vor.u32 %v740, %v741
    %v743 = vshll.u32 920167782, %v728
    %v744 = vshrl.u32 1326507024, %v729
    %v745 = vor.u32 %v743, %v744
    %vm746 = vcmp.lt.s32.totalorder %v727, 1
    %vm747 = vcmp.lt.s32.totalorder %v727, 2
    %vm748 = vcmp.lt.s32.totalorder %v727, 3
    %vm749 = vcmp.lt.s32.totalorder %v727, 4
    %v750 = vsel %vm746, %v730, %v733
    %v751 = vsel %vm749, %v739, 2102212464
    %v752 = vsel %vm748, %v736, %v751
    %v753 = vsel %vm747, %v750, %v752
    %v754 = vsel %vm746, %v733, %v736
    %v755 = vsel %vm749, %v742, 920167782
    %v756 = vsel %vm748, %v739, %v755
    %v757 = vsel %vm747, %v754, %v756
    %v758 = vsel %vm746, %v736, %v739
    %v759 = vsel %vm749, %v745, 1326507024
    %v760 = vsel %vm748, %v742, %v759
    %v761 = vsel %vm747, %v758, %v760
    %v762 = vshll.u32 %v722, 8
    %v763 = vmul.u32.u64.compose %v762, %v761
    %v764 = vextract.low.u32 %v763
    %v765 = vextract.high.u32 %v763
    %v766 = vmul.u32.u64.compose %v762, %v757
    %v767 = vextract.low.u32 %v766
    %v768 = vextract.high.u32 %v766
    %v769 = vmul.u32 %v762, %v753
    %v770 = vadd.s32 %v765, %v767
    %vm771 = vc.u32 %v765, %v767
    %v772 = vadd.s32 %v768, 1
    %v773 = vsel %vm771, %v772, %v768
    %v774 = vadd.s32 %v769, %v773
    %v775 = vadd.s32 %v774, 536870912
    %v776 = vshrl.u32 %v775, 30
    %v777 = vshll.u32 %v776, 30
    %v778 = vsub.s32 %v774, %v777
    %vm779 = vcmp.lt.s32.totalorder %v778, 0
    %v780 = vsub.s32 0, %v778
    %v781 = vsel %vm779, %v780, %v778
    %v782 = vclz %v781
    %v783 = vsub.s32 %v782, 2
    %vm784 = vcmp.gt.s32.totalorder 0, %v783
    %v785 = vsel %vm784, 0, %v783
    %v786 = vsub.s32 32, %v785
    %v787 = vshll.u32 %v778, %v785
    %v788 = vshrl.u32 %v770, %v786
    %v789 = vor.u32 %v787, %v788
    %v790 = vsub.s32 4294967266, %v785
    %v791 = vadd.s32 %v790, 127
    %v792 = vshll.u32 %v791, 23
    %v793 = vor.u32 4788187, %v792
    %v794 = vand.u32 2147483647, %v793
    %v796 = vcvt.s32.f32 %v789
    %v797 = vmul.f32 %v796, %v794
    %v798 = vxor.u32 %v797, 2147483648
    %v799 = vsel %vm716, %v798, %v797
    %v800 = vsub.s32 4, %v776
    %v801 = vsel %vm716, %v800, %v776
    %v802 = vsel %vm715, %v187, %v799
    %v803 = vsel %vm715, 0, %v801
    %v804 = vcosq.f32.pop %v802
    %v805 = vsinq.f32.pop %v802
    %vm806 = vweird.f32 %v187
    %v807 = vadd.s32 %v803, 3
    %v808 = vand.u32 %v807, 3
    %vm809 = vcmp.lt.s32.totalorder %v808, 2
    %vm810 = vcmp.eq.s32.totalorder %v808, 0
    %v811 = vxor.u32 %v805, 2147483648
    %v812 = vsel %vm810, %v804, %v811
    %vm813 = vcmp.eq.s32.totalorder %v808, 2
    %v814 = vxor.u32 %v804, 2147483648
    %v815 = vsel %vm813, %v814, %v805
    %v816 = vsel %vm809, %v812, %v815
    %v817 = vsel %vm806, nan, %v816
    %v818 = vand.u32 2147483647, %v188
    %vm819 = vcmp.le.f32.partialorder %v818, 0.7853982
    %vm820 = vcmp.lt.s32.totalorder %v188, 0
    %v821 = vand.u32 %v188, 2139095040
    %v822 = vshrl.u32 %v821, 23
    %v823 = vsub.s32 %v822, 127
    %v824 = vand.u32 2147483647, %v188
    %v825 = vand.u32 %v824, 8388607
    %v826 = vor.u32 %v825, 8388608
    %v827 = vsub.s32 0, %v826
    %v828 = vadd.s32 %v823, 1
    %vm829 = vcmp.gt.s32.totalorder %v828, 0
    %v830 = vsel %vm829, %v828, 0
    %v831 = vshrl.u32 %v830, 5
    %v832 = vand.u32 %v830, 31
    %v833 = vsub.s32 32, %v832
    %v834 = vshrl.u32 683565275, %v833
    %v835 = vshll.u32 683565275, %v832
    %v836 = vshrl.u32 2475754826, %v833
    %v837 = vor.u32 %v835, %v836
    %v838 = vshll.u32 2475754826, %v832
    %v839 = vshrl.u32 2131351028, %v833
    %v840 = vor.u32 %v838, %v839
    %v841 = vshll.u32 2131351028, %v832
    %v842 = vshrl.u32 2102212464, %v833
    %v843 = vor.u32 %v841, %v842
    %v844 = vshll.u32 2102212464, %v832
    %v845 = vshrl.u32 920167782, %v833
    %v846 = vor.u32 %v844, %v845
    %v847 = vshll.u32 920167782, %v832
    %v848 = vshrl.u32 1326507024, %v833
    %v849 = vor.u32 %v847, %v848
    %vm850 = vcmp.lt.s32.totalorder %v831, 1
    %vm851 = vcmp.lt.s32.totalorder %v831, 2
    %vm852 = vcmp.lt.s32.totalorder %v831, 3
    %vm853 = vcmp.lt.s32.totalorder %v831, 4
    %v854 = vsel %vm850, %v834, %v837
    %v855 = vsel %vm853, %v843, 2102212464
    %v856 = vsel %vm852, %v840, %v855
    %v857 = vsel %vm851, %v854, %v856
    %v858 = vsel %vm850, %v837, %v840
    %v859 = vsel %vm853, %v846, 920167782
    %v860 = vsel %vm852, %v843, %v859
    %v861 = vsel %vm851, %v858, %v860
    %v862 = vsel %vm850, %v840, %v843
    %v863 = vsel %vm853, %v849, 1326507024
    %v864 = vsel %vm852, %v846, %v863
    %v865 = vsel %vm851, %v862, %v864
    %v866 = vshll.u32 %v826, 8
    %v867 = vmul.u32.u64.compose %v866, %v865
    %v868 = vextract.low.u32 %v867
    %v869 = vextract.high.u32 %v867
    %v870 = vmul.u32.u64.compose %v866, %v861
    %v871 = vextract.low.u32 %v870
    %v872 = vextract.high.u32 %v870
    %v873 = vmul.u32 %v866, %v857
    %v874 = vadd.s32 %v869, %v871
    %vm875 = vc.u32 %v869, %v871
    %v876 = vadd.s32 %v872, 1
    %v877 = vsel %vm875, %v876, %v872
    %v878 = vadd.s32 %v873, %v877
    %v879 = vadd.s32 %v878, 536870912
    %v880 = vshrl.u32 %v879, 30
    %v881 = vshll.u32 %v880, 30
    %v882 = vsub.s32 %v878, %v881
    %vm883 = vcmp.lt.s32.totalorder %v882, 0
    %v884 = vsub.s32 0, %v882
    %v885 = vsel %vm883, %v884, %v882
    %v886 = vclz %v885
    %v887 = vsub.s32 %v886, 2
    %vm888 = vcmp.gt.s32.totalorder 0, %v887
    %v889 = vsel %vm888, 0, %v887
    %v890 = vsub.s32 32, %v889
    %v891 = vshll.u32 %v882, %v889
    %v892 = vshrl.u32 %v874, %v890
    %v893 = vor.u32 %v891, %v892
    %v894 = vsub.s32 4294967266, %v889
    %v895 = vadd.s32 %v894, 127
    %v896 = vshll.u32 %v895, 23
    %v897 = vor.u32 4788187, %v896
    %v898 = vand.u32 2147483647, %v897
    %v900 = vcvt.s32.f32 %v893
    %v901 = vmul.f32 %v900, %v898
    %v902 = vxor.u32 %v901, 2147483648
    %v903 = vsel %vm820, %v902, %v901
    %v904 = vsub.s32 4, %v880
    %v905 = vsel %vm820, %v904, %v880
    %v906 = vsel %vm819, %v188, %v903
    %v907 = vsel %vm819, 0, %v905
    %v908 = vcosq.f32.pop %v906
    %v909 = vsinq.f32.pop %v906
    %vm910 = vweird.f32 %v188
    %v911 = vadd.s32 %v907, 3
    %v912 = vand.u32 %v911, 3
    %vm913 = vcmp.lt.s32.totalorder %v912, 2
    %vm914 = vcmp.eq.s32.totalorder %v912, 0
    %v915 = vxor.u32 %v909, 2147483648
    %v916 = vsel %vm914, %v908, %v915
    %vm917 = vcmp.eq.s32.totalorder %v912, 2
    %v918 = vxor.u32 %v908, 2147483648
    %v919 = vsel %vm917, %v918, %v909
    %v920 = vsel %vm913, %v916, %v919
    %v921 = vsel %vm910, nan, %v920
    %v922 = vand.u32 2147483647, %v189
    %vm923 = vcmp.le.f32.partialorder %v922, 0.7853982
    %vm924 = vcmp.lt.s32.totalorder %v189, 0
    %v925 = vand.u32 %v189, 2139095040
    %v926 = vshrl.u32 %v925, 23
    %v927 = vsub.s32 %v926, 127
    %v928 = vand.u32 2147483647, %v189
    %v929 = vand.u32 %v928, 8388607
    %v930 = vor.u32 %v929, 8388608
    %v931 = vsub.s32 0, %v930
    %v932 = vadd.s32 %v927, 1
    %vm933 = vcmp.gt.s32.totalorder %v932, 0
    %v934 = vsel %vm933, %v932, 0
    %v935 = vshrl.u32 %v934, 5
    %v936 = vand.u32 %v934, 31
    %v937 = vsub.s32 32, %v936
    %v938 = vshrl.u32 683565275, %v937
    %v939 = vshll.u32 683565275, %v936
    %v940 = vshrl.u32 2475754826, %v937
    %v941 = vor.u32 %v939, %v940
    %v942 = vshll.u32 2475754826, %v936
    %v943 = vshrl.u32 2131351028, %v937
    %v944 = vor.u32 %v942, %v943
    %v945 = vshll.u32 2131351028, %v936
    %v946 = vshrl.u32 2102212464, %v937
    %v947 = vor.u32 %v945, %v946
    %v948 = vshll.u32 2102212464, %v936
    %v949 = vshrl.u32 920167782, %v937
    %v950 = vor.u32 %v948, %v949
    %v951 = vshll.u32 920167782, %v936
    %v952 = vshrl.u32 1326507024, %v937
    %v953 = vor.u32 %v951, %v952
    %vm954 = vcmp.lt.s32.totalorder %v935, 1
    %vm955 = vcmp.lt.s32.totalorder %v935, 2
    %vm956 = vcmp.lt.s32.totalorder %v935, 3
    %vm957 = vcmp.lt.s32.totalorder %v935, 4
    %v958 = vsel %vm954, %v938, %v941
    %v959 = vsel %vm957, %v947, 2102212464
    %v960 = vsel %vm956, %v944, %v959
    %v961 = vsel %vm955, %v958, %v960
    %v962 = vsel %vm954, %v941, %v944
    %v963 = vsel %vm957, %v950, 920167782
    %v964 = vsel %vm956, %v947, %v963
    %v965 = vsel %vm955, %v962, %v964
    %v966 = vsel %vm954, %v944, %v947
    %v967 = vsel %vm957, %v953, 1326507024
    %v968 = vsel %vm956, %v950, %v967
    %v969 = vsel %vm955, %v966, %v968
    %v970 = vshll.u32 %v930, 8
    %v971 = vmul.u32.u64.compose %v970, %v969
    %v972 = vextract.low.u32 %v971
    %v973 = vextract.high.u32 %v971
    %v974 = vmul.u32.u64.compose %v970, %v965
    %v975 = vextract.low.u32 %v974
    %v976 = vextract.high.u32 %v974
    %v977 = vmul.u32 %v970, %v961
    %v978 = vadd.s32 %v973, %v975
    %vm979 = vc.u32 %v973, %v975
    %v980 = vadd.s32 %v976, 1
    %v981 = vsel %vm979, %v980, %v976
    %v982 = vadd.s32 %v977, %v981
    %v983 = vadd.s32 %v982, 536870912
    %v984 = vshrl.u32 %v983, 30
    %v985 = vshll.u32 %v984, 30
    %v986 = vsub.s32 %v982, %v985
    %vm987 = vcmp.lt.s32.totalorder %v986, 0
    %v988 = vsub.s32 0, %v986
    %v989 = vsel %vm987, %v988, %v986
    %v990 = vclz %v989
    %v991 = vsub.s32 %v990, 2
    %vm992 = vcmp.gt.s32.totalorder 0, %v991
    %v993 = vsel %vm992, 0, %v991
    %v994 = vsub.s32 32, %v993
    %v995 = vshll.u32 %v986, %v993
    %v996 = vshrl.u32 %v978, %v994
    %v997 = vor.u32 %v995, %v996
    %v998 = vsub.s32 4294967266, %v993
    %v999 = vadd.s32 %v998, 127
    %v1000 = vshll.u32 %v999, 23
    %v1001 = vor.u32 4788187, %v1000
    %v1002 = vand.u32 2147483647, %v1001
    %v1004 = vcvt.s32.f32 %v997
    %v1005 = vmul.f32 %v1004, %v1002
    %v1006 = vxor.u32 %v1005, 2147483648
    %v1007 = vsel %vm924, %v1006, %v1005
    %v1008 = vsub.s32 4, %v984
    %v1009 = vsel %vm924, %v1008, %v984
    %v1010 = vsel %vm923, %v189, %v1007
    %v1011 = vsel %vm923, 0, %v1009
    %v1012 = vcosq.f32.pop %v1010
    %v1013 = vsinq.f32.pop %v1010
    %vm1014 = vweird.f32 %v189
    %v1015 = vadd.s32 %v1011, 3
    %v1016 = vand.u32 %v1015, 3
    %vm1017 = vcmp.lt.s32.totalorder %v1016, 2
    %vm1018 = vcmp.eq.s32.totalorder %v1016, 0
    %v1019 = vxor.u32 %v1013, 2147483648
    %v1020 = vsel %vm1018, %v1012, %v1019
    %vm1021 = vcmp.eq.s32.totalorder %v1016, 2
    %v1022 = vxor.u32 %v1012, 2147483648
    %v1023 = vsel %vm1021, %v1022, %v1013
    %v1024 = vsel %vm1017, %v1020, %v1023
    %v1025 = vsel %vm1014, nan, %v1024
    %v1026 = vmul.f32 %v164, %v713
    %v1027 = vmul.f32 %v171, %v817
    %v1028 = vmul.f32 %v178, %v921
    %v1029 = vmul.f32 %v185, %v1025
    %1030 = vst [vmem:[#allocation4 + $0x20] sm:$0xff] %v1026
    %1031 = vst [vmem:[#allocation4 + $0x28] sm:$0xff] %v1027
    %1032 = vst [vmem:[#allocation4 + $0x30] sm:$0xff] %v1028
    %1033 = vst [vmem:[#allocation4 + $0x38] sm:$0xff] %v1029
    // Predicated region
    $region2: #{tpu_custom_call.1} parent=1 // pred_check
      _
    $region3: #{tpu_custom_call.1} parent=1 // pred_check_branch
      %1035 = sbr.rel (0) target = $region5
    $region4: #{tpu_custom_call.1} parent=1 // pred_region
      %s1037 = ssub.s32 1024, 1024
      %1038 = vsyncadd [#allocation5], %s1037
      %s1040 = sshll.u32 [#allocation4], 4
      %s1041 = int_to_ptr.vmem [resolvable:$true] %s1040
      %1043 = dma.vmem_to_hbm [thread:$0]  %s1041, 1024, %s1, [#allocation5]
    $region5: #{tpu_custom_call.1} parent=1 // pred_fallthru
      _
    // Predicated region
    $region6: #{tpu_custom_call.1} parent=1 // pred_check
      _
    $region7: #{tpu_custom_call.1} parent=1 // pred_check_branch
      %1045 = sbr.rel (0) target = $region9
    $region8: #{tpu_custom_call.1} parent=1 // pred_region
      %1046 = dma.done [#allocation5], 1024
    $region9: #{tpu_custom_call.1} parent=1 // pred_fallthru
      _
    %1047 = vsyncpa [#allocation5], 1

</llo_original>
